<compile_context>
chip_gen: v7x
topology: tpu7x:2x2x1
jax: 0.10.0
libtpu: 0.0.40
codegen_flags: <defaults>
</compile_context>

<pallas_src>
import functools

import jax
import jax.numpy as jnp
from jax.experimental import pallas as pl
from jax.experimental.pallas import tpu as pltpu


def _mar_kernel(a_ref, b_ref, x_ref, o_ref, *, block_batch, seq_length,
                compute_dtype):
    # a_ref: (T, T), b_ref: (N, N)
    # x_ref / o_ref: (block_batch * T, N) -- rows laid out (b, t) row-major.
    a = a_ref[...]
    bmat = b_ref[...]
    x = x_ref[...]
    if compute_dtype is not None:
        a = a.astype(compute_dtype)
        bmat = bmat.astype(compute_dtype)
        x = x.astype(compute_dtype)

    # Node-side contraction fused over the whole batch block: one big,
    # sublane-dense MXU matmul (block_batch*T rows) instead of many tiny ones.
    y = jnp.dot(x, bmat, preferred_element_type=jnp.float32)  # (Bt*T, N)
    if compute_dtype is not None:
        y = y.astype(compute_dtype)

    # Time-side contraction per batch element on VMEM-resident data.
    # block_batch is a small static int -> unrolls to a handful of 2-D
    # MXU matmuls with no per-step grid/DMA overhead.
    for b in range(block_batch):
        rows = slice(b * seq_length, (b + 1) * seq_length)
        z = jnp.dot(a, y[rows, :], preferred_element_type=jnp.float32)  # (T, N)
        o_ref[rows, :] = z.astype(o_ref.dtype)


def _pick_block_batch(batch, seq_length, num_nodes, itemsize,
                      max_block_batch=16, vmem_budget_bytes=8 * 1024 * 1024):
    """Largest divisor of `batch` (<= max_block_batch) whose double-buffered
    input+output blocks fit comfortably in VMEM and whose block rows satisfy
    the (8, 128) sublane rule (or cover the full row extent)."""
    best = None
    limit = min(batch, max_block_batch)
    for bt in range(1, limit + 1):
        if batch % bt != 0:
            continue
        rows = bt * seq_length
        # Sublane rule: second-to-last block dim must be a multiple of 8
        # unless it equals the full array extent (bt == batch).
        if rows % 8 != 0 and bt != batch:
            continue
        # 2 buffers for the input block + 2 for the output block.
        if 4 * rows * num_nodes * itemsize <= vmem_budget_bytes:
            best = bt
    if best is None:
        best = batch  # full-extent block always satisfies the tiling rule
    return best


def mar_regressor_forward(A, B, res_t_s, *, block_batch=None,
                          compute_dtype=None):
    """Computes A @ res_t_s @ B batched over the leading axis."""
    batch, T, N = res_t_s.shape
    assert A.shape == (T, T) and B.shape == (N, N)

    itemsize = jnp.dtype(res_t_s.dtype).itemsize
    if block_batch is None:
        block_batch = _pick_block_batch(batch, T, N, itemsize)
    assert batch % block_batch == 0, "block_batch must divide batch"
    bt = block_batch
    grid = (batch // bt,)

    # Free view change: (B, T, N) row-major == (B*T, N) row-major.
    x2d = res_t_s.reshape(batch * T, N)

    # Conservative scoped-VMEM limit: big enough for the chosen tiles, always
    # below the 64 MiB physical VMEM of a v7x TensorCore.
    est_bytes = (2 * T * T + 2 * N * N) * jnp.dtype(A.dtype).itemsize \
        + 4 * bt * T * N * itemsize
    vmem_limit = int(min(max(2 * est_bytes, 32 * 1024 * 1024),
                         60 * 1024 * 1024))

    kernel = functools.partial(_mar_kernel, block_batch=bt, seq_length=T,
                               compute_dtype=compute_dtype)

    out2d = pl.pallas_call(
        kernel,
        out_shape=jax.ShapeDtypeStruct((batch * T, N), res_t_s.dtype),
        grid_spec=pltpu.PrefetchScalarGridSpec(
            num_scalar_prefetch=0,
            grid=grid,
            in_specs=[
                pl.BlockSpec((T, T), lambda i: (0, 0)),          # A, resident
                pl.BlockSpec((N, N), lambda i: (0, 0)),          # B, resident
                pl.BlockSpec((bt * T, N), lambda i: (i, 0)),     # batch block
            ],
            out_specs=pl.BlockSpec((bt * T, N), lambda i: (i, 0)),
        ),
        compiler_params=pltpu.CompilerParams(
            dimension_semantics=("parallel",),   # shard blocks across v7x TCs
            vmem_limit_bytes=vmem_limit,
        ),
    )(A, B, x2d)

    return out2d.reshape(batch, T, N)


def make_mar_params(num_nodes, seq_length, init="diagonal", scaling=0.001,
                    key=None, dtype=jnp.float32):
    """Deterministic parameter construction mirroring mar_regressor.__init__."""
    if key is None:
        key = jax.random.PRNGKey(0)
    ka, kb = jax.random.split(key)
    if init == "random":
        A = jax.random.normal(ka, (seq_length, seq_length), dtype) * scaling
        B = jax.random.normal(kb, (num_nodes, num_nodes), dtype) * scaling
    elif init == "zeros":
        A = jnp.zeros((seq_length, seq_length), dtype)
        B = jnp.zeros((num_nodes, num_nodes), dtype)
    elif init == "diagonal":
        A = jnp.eye(seq_length, dtype=dtype) * scaling
        B = jnp.eye(num_nodes, dtype=dtype) * scaling
    else:
        A = jax.random.normal(ka, (seq_length, seq_length), dtype) * scaling
        B = jnp.eye(num_nodes, dtype=dtype) * scaling
    return A, B


def _ref(A, B, x):
    # Same semantics as torch: A @ x @ B (broadcast over batch).
    return jnp.einsum("ts,bsn,nm->btm", A, x, B)


if __name__ == "__main__":
    key = jax.random.PRNGKey(0)
    k_params, k_x1, k_x2 = jax.random.split(key, 3)

    # Case 1: batch=2, seq_length=8, num_nodes=16, diagonal init, 1 grid step.
    batch, T, N = 2, 8, 16
    A, B = make_mar_params(N, T, init="diagonal", scaling=0.001, key=k_params)
    x = jax.random.normal(k_x1, (batch, T, N), jnp.float32)
    out = jax.block_until_ready(mar_regressor_forward(A, B, x))
    assert out.shape == (batch, T, N)
    assert jnp.allclose(out, _ref(A, B, x), rtol=1e-4, atol=1e-8)

    # Case 2: batch=4, random init, explicit block_batch=2 -> 2-step grid path.
    batch2 = 4
    A2, B2 = make_mar_params(N, T, init="random", scaling=0.001, key=k_params)
    x2 = jax.random.normal(k_x2, (batch2, T, N), jnp.float32)
    out2 = jax.block_until_ready(
        mar_regressor_forward(A2, B2, x2, block_batch=2))
    assert out2.shape == (batch2, T, N)
    assert jnp.allclose(out2, _ref(A2, B2, x2), rtol=1e-4, atol=1e-8)

    print("KERNEL_OK")
</pallas_src>

<mosaic_0001>
module attributes {stable_mosaic.version = 11 : i64} {
  func.func @_mar_kernel(%arg0: i32, %arg1: memref<8x8xf32, #tpu.memory_space<vmem>>, %arg2: memref<16x16xf32, #tpu.memory_space<vmem>>, %arg3: memref<16x16xf32, #tpu.memory_space<vmem>>, %arg4: memref<16x16xf32, #tpu.memory_space<vmem>>) attributes {dimension_semantics = [#tpu.dimension_semantics<parallel>], iteration_bounds = array<i64: 1>, scalar_prefetch = 0 : i64, scratch_operands = 0 : i64, tpu.core_type = #tpu.core_type<tc>, window_params = [{pipeline_mode = #tpu.pipeline_mode<synchronous>, transform_indices = @transform_0, window_bounds = array<i64: 8, 8>}, {pipeline_mode = #tpu.pipeline_mode<synchronous>, transform_indices = @transform_1, window_bounds = array<i64: 16, 16>}, {transform_indices = @transform_2, window_bounds = array<i64: 16, 16>}, {transform_indices = @transform_3, window_bounds = array<i64: 16, 16>}]} {
    %c0 = arith.constant 0 : index
    %c0_0 = arith.constant 0 : index
    %0 = vector.load %arg1[%c0, %c0_0] : memref<8x8xf32, #tpu.memory_space<vmem>>, vector<8x8xf32>
    %c0_1 = arith.constant 0 : index
    %c0_2 = arith.constant 0 : index
    %1 = vector.load %arg2[%c0_1, %c0_2] : memref<16x16xf32, #tpu.memory_space<vmem>>, vector<16x16xf32>
    %c0_3 = arith.constant 0 : index
    %c0_4 = arith.constant 0 : index
    %2 = vector.load %arg3[%c0_3, %c0_4] : memref<16x16xf32, #tpu.memory_space<vmem>>, vector<16x16xf32>
    %cst = arith.constant dense<0.000000e+00> : vector<16x16xf32>
    %3 = tpu.matmul %2, %1, %cst {dimension_numbers = #tpu.dot_dimension_numbers<[1], [0], [0], [1], [0, 0, 1, 1], [], []>} : vector<16x16xf32>, vector<16x16xf32>, vector<16x16xf32> -> vector<16x16xf32>
    %4 = vector.extract_strided_slice %3 {offsets = [0, 0], sizes = [8, 16], strides = [1, 1]} : vector<16x16xf32> to vector<8x16xf32>
    %cst_5 = arith.constant dense<0.000000e+00> : vector<8x16xf32>
    %5 = tpu.matmul %0, %4, %cst_5 {dimension_numbers = #tpu.dot_dimension_numbers<[1], [0], [0], [1], [0, 0, 1, 1], [], []>} : vector<8x8xf32>, vector<8x16xf32>, vector<8x16xf32> -> vector<8x16xf32>
    %c0_6 = arith.constant 0 : index
    %c0_7 = arith.constant 0 : index
    %6 = vector.load %arg4[%c0_6, %c0_7] : memref<16x16xf32, #tpu.memory_space<vmem>>, vector<8x16xf32>
    tpu.vector_store %arg4[%c0_6, %c0_7], %5 {strides = array<i32>} : memref<16x16xf32, #tpu.memory_space<vmem>>, vector<8x16xf32>,
    %7 = vector.extract_strided_slice %3 {offsets = [8, 0], sizes = [8, 16], strides = [1, 1]} : vector<16x16xf32> to vector<8x16xf32>
    %cst_8 = arith.constant dense<0.000000e+00> : vector<8x16xf32>
    %8 = tpu.matmul %0, %7, %cst_8 {dimension_numbers = #tpu.dot_dimension_numbers<[1], [0], [0], [1], [0, 0, 1, 1], [], []>} : vector<8x8xf32>, vector<8x16xf32>, vector<8x16xf32> -> vector<8x16xf32>
    %c8 = arith.constant 8 : index
    %c0_9 = arith.constant 0 : index
    %9 = vector.load %arg4[%c8, %c0_9] : memref<16x16xf32, #tpu.memory_space<vmem>>, vector<8x16xf32>
    tpu.vector_store %arg4[%c8, %c0_9], %8 {strides = array<i32>} : memref<16x16xf32, #tpu.memory_space<vmem>>, vector<8x16xf32>,
    return
  }
  func.func @transform_0(%arg0: i32) -> (i32, i32) {
    %c0_i32 = arith.constant 0 : i32
    %c0_i32_0 = arith.constant 0 : i32
    %c0_i32_1 = arith.constant 0 : i32
    return %c0_i32, %c0_i32_0 : i32, i32
  }
  func.func @transform_1(%arg0: i32) -> (i32, i32) {
    %c0_i32 = arith.constant 0 : i32
    %c0_i32_0 = arith.constant 0 : i32
    %c0_i32_1 = arith.constant 0 : i32
    return %c0_i32, %c0_i32_0 : i32, i32
  }
  func.func @transform_2(%arg0: i32) -> (i32, i32) {
    %c0_i32 = arith.constant 0 : i32
    %c0_i32_0 = arith.constant 0 : i32
    return %arg0, %c0_i32 : i32, i32
  }
  func.func @transform_3(%arg0: i32) -> (i32, i32) {
    %c0_i32 = arith.constant 0 : i32
    %c0_i32_0 = arith.constant 0 : i32
    return %arg0, %c0_i32 : i32, i32
  }
}

</mosaic_0001>

<llo_original>
// kernel: tpu_custom_call.1
$region0: #{tpu_custom_call.1}
  #allocation0 [shape = 'u32[]', space=smem, size = 0x4, offset = 0x4, fixed_abs, tag = 'smem constant byte address 0x4 - core index']
  #allocation1 [shape = 'u32[144,128]{1,0:T(1,128)}', space=vmem, size = 0x12000, scoped, tag = 'internal scratch']
  %s0 = inlined_call_operand.hbm [shape: f32[8,8], index: 0, kind: input, shape index: {}]
  %s1 = inlined_call_operand.hbm [shape: f32[16,16], index: 1, kind: input, shape index: {}]
  %s2 = inlined_call_operand.hbm [shape: f32[16,16], index: 2, kind: input, shape index: {}]
  %s3 = inlined_call_operand.hbm [shape: f32[16,16], index: 3, kind: output, shape index: {}]
  %s4 = sld [smem:[#allocation0]]
  $region34: #{tpu_custom_call.1} parent=0
    _
  %s6 = ssub.s32 1, %s4
  %s7 = scalar_select 0, %s6, %s4
  $region1: #{tpu_custom_call.1} parent=0
    #allocation2 [shape = 'u8[4096]{0}', space=vmem, size = 0x1000, scoped, tag = 'input window, operand 0, single buffered']
    #allocation3 [shape = 's32[1]{0}', space=sflag, size = 0x4, scoped, tag = 'scoped memory for tpu_custom_call.1']
    #allocation4 [shape = 's32[1]{0}', space=sflag, size = 0x4, scoped, tag = 'scoped memory for tpu_custom_call.1']
    #allocation5 [shape = 'u8[8192]{0}', space=vmem, size = 0x2000, scoped, tag = 'input window, operand 1, single buffered']
    #allocation6 [shape = 's32[1]{0}', space=sflag, size = 0x4, scoped, tag = 'scoped memory for tpu_custom_call.1']
    #allocation7 [shape = 'u8[8192]{0}', space=vmem, size = 0x2000, scoped, tag = 'input window, operand 2, single buffered']
    #allocation8 [shape = 'u8[8192]{0}', space=vmem, size = 0x2000, scoped, tag = 'output window, operand 0, single buffered']
    %8 = vsyncpa [#allocation3], 0
    %9 = vsyncpa [#allocation6], 0
    %10 = vsyncpa [#allocation4], 0
    // Predicated region
    $region2: #{tpu_custom_call.1} parent=1 // pred_check
      _
    $region3: #{tpu_custom_call.1} parent=1 // pred_check_branch
      %12 = sbr.rel (0) target = $region5
    $region4: #{tpu_custom_call.1} parent=1 // pred_region
      %s14 = ssub.s32 128, 128
      %15 = vsyncadd [#allocation3], %s14
      %s17 = sshll.u32 [#allocation2], 4
      %s18 = int_to_ptr.vmem [resolvable:$true] %s17
      %20 = dma.hbm_to_vmem [thread:$0]  %s0, 128, %s18, [#allocation3]
    $region5: #{tpu_custom_call.1} parent=1 // pred_fallthru
      _
    // Predicated region
    $region6: #{tpu_custom_call.1} parent=1 // pred_check
      _
    $region7: #{tpu_custom_call.1} parent=1 // pred_check_branch
      %22 = sbr.rel (0) target = $region9
    $region8: #{tpu_custom_call.1} parent=1 // pred_region
      %s24 = ssub.s32 256, 256
      %25 = vsyncadd [#allocation6], %s24
      %s26 = sshll.u32 [#allocation5], 4
      %s27 = int_to_ptr.vmem [resolvable:$true] %s26
      %32 = dma.hbm_to_vmem [thread:$0]  %s1, 256, %s27, [#allocation6], 128, 128, 8
    $region9: #{tpu_custom_call.1} parent=1 // pred_fallthru
      _
    // Predicated region
    $region10: #{tpu_custom_call.1} parent=1 // pred_check
      _
    $region11: #{tpu_custom_call.1} parent=1 // pred_check_branch
      %34 = sbr.rel (0) target = $region13
    $region12: #{tpu_custom_call.1} parent=1 // pred_region
      %s36 = ssub.s32 256, 256
      %37 = vsyncadd [#allocation6], %s36
      %s38 = sshll.u32 [#allocation7], 4
      %s39 = int_to_ptr.vmem [resolvable:$true] %s38
      %44 = dma.hbm_to_vmem [thread:$0]  %s2, 256, %s39, [#allocation6], 128, 128, 8
    $region13: #{tpu_custom_call.1} parent=1 // pred_fallthru
      _
    // Predicated region
    $region14: #{tpu_custom_call.1} parent=1 // pred_check
      _
    $region15: #{tpu_custom_call.1} parent=1 // pred_check_branch
      %46 = sbr.rel (0) target = $region17
    $region16: #{tpu_custom_call.1} parent=1 // pred_region
      %47 = dma.done [#allocation3], 128
    $region17: #{tpu_custom_call.1} parent=1 // pred_fallthru
      _
    // Predicated region
    $region18: #{tpu_custom_call.1} parent=1 // pred_check
      _
    $region19: #{tpu_custom_call.1} parent=1 // pred_check_branch
      %49 = sbr.rel (0) target = $region21
    $region20: #{tpu_custom_call.1} parent=1 // pred_region
      %50 = dma.done [#allocation6], 256
    $region21: #{tpu_custom_call.1} parent=1 // pred_fallthru
      _
    // Predicated region
    $region22: #{tpu_custom_call.1} parent=1 // pred_check
      _
    $region23: #{tpu_custom_call.1} parent=1 // pred_check_branch
      %52 = sbr.rel (0) target = $region25
    $region24: #{tpu_custom_call.1} parent=1 // pred_region
      %53 = dma.done [#allocation6], 256
    $region25: #{tpu_custom_call.1} parent=1 // pred_fallthru
      _
    %v54 = vld [vmem:[#allocation2] sm:$0xff]
    %v55 = vld [vmem:[#allocation5] sm:$0xff]
    %v56 = vld [vmem:[#allocation5 + $0x8] sm:$0xff]
    %v57 = vld [vmem:[#allocation7] sm:$0xff]
    %v58 = vld [vmem:[#allocation7 + $0x8] sm:$0xff]
    %vm59 = vcmask 130048
    %v61 = vsel %vm59, %v57, 0
    %v64 = vsel %vm59, %v58, 0
    %66 = vmatprep.subr.mxu0 0.0
    %67 = vmatpush1.msra.mxu0 %v55
    %68 = vmatprep.subr.mxu0 0.0
    %69 = vmatpush1.msra.mxu0 %v56
    %70 = vmatprep.subr.mxu0 0.0
    %71 = vmatpush1.msra.mxu0 0.0
    %72 = vmatprep.subr.mxu0 0.0
    %73 = vmatpush1.msra.mxu0 0.0
    %74 = vmatprep.subr.mxu0 0.0
    %75 = vmatpush1.msra.mxu0 0.0
    %76 = vmatprep.subr.mxu0 0.0
    %77 = vmatpush1.msra.mxu0 0.0
    %78 = vmatprep.subr.mxu0 0.0
    %79 = vmatpush1.msra.mxu0 0.0
    %80 = vmatprep.subr.mxu0 0.0
    %81 = vmatpush1.msra.mxu0 0.0
    %82 = vmatprep.subr.mxu0 0.0
    %83 = vmatpush1.msra.mxu0 0.0
    %84 = vmatprep.subr.mxu0 0.0
    %85 = vmatpush1.msra.mxu0 0.0
    %86 = vmatprep.subr.mxu0 0.0
    %87 = vmatpush1.msra.mxu0 0.0
    %88 = vmatprep.subr.mxu0 0.0
    %89 = vmatpush1.msra.mxu0 0.0
    %90 = vmatprep.subr.mxu0 0.0
    %91 = vmatpush1.msra.mxu0 0.0
    %92 = vmatprep.subr.mxu0 0.0
    %93 = vmatpush1.msra.mxu0 0.0
    %94 = vmatprep.subr.mxu0 0.0
    %95 = vmatpush1.msra.mxu0 0.0
    %96 = vmatprep.subr.mxu0 0.0
    %97 = vmatpush1.msra.mxu0 0.0
    %98 = vmatprep.subr.mxu0 0.0
    %99 = vmatpush1.msra.mxu0 0.0
    %100 = vmatprep.subr.mxu0 0.0
    %101 = vmatpush1.msra.mxu0 0.0
    %102 = vmatprep.subr.mxu0 0.0
    %103 = vmatpush1.msra.mxu0 0.0
    %104 = vmatprep.subr.mxu0 0.0
    %105 = vmatpush1.msra.mxu0 0.0
    %106 = vmatprep.subr.mxu0 0.0
    %107 = vmatpush1.msra.mxu0 0.0
    %108 = vmatprep.subr.mxu0 0.0
    %109 = vmatpush1.msra.mxu0 0.0
    %110 = vmatprep.subr.mxu0 0.0
    %111 = vmatpush1.msra.mxu0 0.0
    %112 = vmatprep.subr.mxu0 0.0
    %113 = vmatpush1.msra.mxu0 0.0
    %114 = vmatprep.subr.mxu0 0.0
    %115 = vmatpush1.msra.mxu0 0.0
    %116 = vmatprep.subr.mxu0 0.0
    %117 = vmatpush1.msra.mxu0 0.0
    %118 = vmatprep.subr.mxu0 0.0
    %119 = vmatpush1.msra.mxu0 0.0
    %120 = vmatprep.subr.mxu0 0.0
    %121 = vmatpush1.msra.mxu0 0.0
    %122 = vmatprep.subr.mxu0 0.0
    %123 = vmatpush1.msra.mxu0 0.0
    %124 = vmatprep.subr.mxu0 0.0
    %125 = vmatpush1.msra.mxu0 0.0
    %126 = vmatprep.subr.mxu0 0.0
    %127 = vmatpush1.msra.mxu0 0.0
    %128 = vmatprep.subr.mxu0 0.0
    %129 = vmatpush1.msra.mxu0 0.0
    %130 = vmatprep.mubr.f32.mxu0 0.0
    %131 = vmatmul.mubr.f32.gmra.mrb[0].mxu0 %v61
    %v132 = vpop.f32.mrb[0].mxu0
    %v133 = vadd.f32 0.0, %v132
    %v134 = vpop.f32.mrb[0].mxu0
    %135 = vmatprep.mubr.f32.mxu0 0.0
    %136 = vmatmul.mubr.f32.gmra.mrb[0].mxu0 %v64
    %v137 = vpop.f32.mrb[0].mxu0
    %v138 = vadd.f32 0.0, %v137
    %v139 = vpop.f32.mrb[0].mxu0
    %140 = vdwg.mxu0
    %vm141 = vcmask 64512
    %v143 = vsel %vm141, %v54, 0
    %145 = vmatprep.subr.mxu0 0.0
    %146 = vmatpush1.msra.mxu0 %v133
    %147 = vmatprep.subr.mxu0 0.0
    %148 = vmatpush1.msra.mxu0 0.0
    %149 = vmatprep.subr.mxu0 0.0
    %150 = vmatpush1.msra.mxu0 0.0
    %151 = vmatprep.subr.mxu0 0.0
    %152 = vmatpush1.msra.mxu0 0.0
    %153 = vmatprep.subr.mxu0 0.0
    %154 = vmatpush1.msra.mxu0 0.0
    %155 = vmatprep.subr.mxu0 0.0
    %156 = vmatpush1.msra.mxu0 0.0
    %157 = vmatprep.subr.mxu0 0.0
    %158 = vmatpush1.msra.mxu0 0.0
    %159 = vmatprep.subr.mxu0 0.0
    %160 = vmatpush1.msra.mxu0 0.0
    %161 = vmatprep.subr.mxu0 0.0
    %162 = vmatpush1.msra.mxu0 0.0
    %163 = vmatprep.subr.mxu0 0.0
    %164 = vmatpush1.msra.mxu0 0.0
    %165 = vmatprep.subr.mxu0 0.0
    %166 = vmatpush1.msra.mxu0 0.0
    %167 = vmatprep.subr.mxu0 0.0
    %168 = vmatpush1.msra.mxu0 0.0
    %169 = vmatprep.subr.mxu0 0.0
    %170 = vmatpush1.msra.mxu0 0.0
    %171 = vmatprep.subr.mxu0 0.0
    %172 = vmatpush1.msra.mxu0 0.0
    %173 = vmatprep.subr.mxu0 0.0
    %174 = vmatpush1.msra.mxu0 0.0
    %175 = vmatprep.subr.mxu0 0.0
    %176 = vmatpush1.msra.mxu0 0.0
    %177 = vmatprep.subr.mxu0 0.0
    %178 = vmatpush1.msra.mxu0 0.0
    %179 = vmatprep.subr.mxu0 0.0
    %180 = vmatpush1.msra.mxu0 0.0
    %181 = vmatprep.subr.mxu0 0.0
    %182 = vmatpush1.msra.mxu0 0.0
    %183 = vmatprep.subr.mxu0 0.0
    %184 = vmatpush1.msra.mxu0 0.0
    %185 = vmatprep.subr.mxu0 0.0
    %186 = vmatpush1.msra.mxu0 0.0
    %187 = vmatprep.subr.mxu0 0.0
    %188 = vmatpush1.msra.mxu0 0.0
    %189 = vmatprep.subr.mxu0 0.0
    %190 = vmatpush1.msra.mxu0 0.0
    %191 = vmatprep.subr.mxu0 0.0
    %192 = vmatpush1.msra.mxu0 0.0
    %193 = vmatprep.subr.mxu0 0.0
    %194 = vmatpush1.msra.mxu0 0.0
    %195 = vmatprep.subr.mxu0 0.0
    %196 = vmatpush1.msra.mxu0 0.0
    %197 = vmatprep.subr.mxu0 0.0
    %198 = vmatpush1.msra.mxu0 0.0
    %199 = vmatprep.subr.mxu0 0.0
    %200 = vmatpush1.msra.mxu0 0.0
    %201 = vmatprep.subr.mxu0 0.0
    %202 = vmatpush1.msra.mxu0 0.0
    %203 = vmatprep.subr.mxu0 0.0
    %204 = vmatpush1.msra.mxu0 0.0
    %205 = vmatprep.subr.mxu0 0.0
    %206 = vmatpush1.msra.mxu0 0.0
    %207 = vmatprep.subr.mxu0 0.0
    %208 = vmatpush1.msra.mxu0 0.0
    %209 = vmatprep.mubr.f32.mxu0 0.0
    %210 = vmatmul.mubr.f32.gmra.mrb[0].mxu0 %v143
    %v211 = vpop.f32.mrb[0].mxu0
    %v212 = vadd.f32 0.0, %v211
    %v213 = vpop.f32.mrb[0].mxu0
    %214 = vdwg.mxu0
    %215 = vst.msk [vmem:[#allocation8] sm:$0xff] %vm59, %v212
    %216 = vmatprep.subr.mxu0 0.0
    %217 = vmatpush1.msra.mxu0 %v138
    %218 = vmatprep.subr.mxu0 0.0
    %219 = vmatpush1.msra.mxu0 0.0
    %220 = vmatprep.subr.mxu0 0.0
    %221 = vmatpush1.msra.mxu0 0.0
    %222 = vmatprep.subr.mxu0 0.0
    %223 = vmatpush1.msra.mxu0 0.0
    %224 = vmatprep.subr.mxu0 0.0
    %225 = vmatpush1.msra.mxu0 0.0
    %226 = vmatprep.subr.mxu0 0.0
    %227 = vmatpush1.msra.mxu0 0.0
    %228 = vmatprep.subr.mxu0 0.0
    %229 = vmatpush1.msra.mxu0 0.0
    %230 = vmatprep.subr.mxu0 0.0
    %231 = vmatpush1.msra.mxu0 0.0
    %232 = vmatprep.subr.mxu0 0.0
    %233 = vmatpush1.msra.mxu0 0.0
    %234 = vmatprep.subr.mxu0 0.0
    %235 = vmatpush1.msra.mxu0 0.0
    %236 = vmatprep.subr.mxu0 0.0
    %237 = vmatpush1.msra.mxu0 0.0
    %238 = vmatprep.subr.mxu0 0.0
    %239 = vmatpush1.msra.mxu0 0.0
    %240 = vmatprep.subr.mxu0 0.0
    %241 = vmatpush1.msra.mxu0 0.0
    %242 = vmatprep.subr.mxu0 0.0
    %243 = vmatpush1.msra.mxu0 0.0
    %244 = vmatprep.subr.mxu0 0.0
    %245 = vmatpush1.msra.mxu0 0.0
    %246 = vmatprep.subr.mxu0 0.0
    %247 = vmatpush1.msra.mxu0 0.0
    %248 = vmatprep.subr.mxu0 0.0
    %249 = vmatpush1.msra.mxu0 0.0
    %250 = vmatprep.subr.mxu0 0.0
    %251 = vmatpush1.msra.mxu0 0.0
    %252 = vmatprep.subr.mxu0 0.0
    %253 = vmatpush1.msra.mxu0 0.0
    %254 = vmatprep.subr.mxu0 0.0
    %255 = vmatpush1.msra.mxu0 0.0
    %256 = vmatprep.subr.mxu0 0.0
    %257 = vmatpush1.msra.mxu0 0.0
    %258 = vmatprep.subr.mxu0 0.0
    %259 = vmatpush1.msra.mxu0 0.0
    %260 = vmatprep.subr.mxu0 0.0
    %261 = vmatpush1.msra.mxu0 0.0
    %262 = vmatprep.subr.mxu0 0.0
    %263 = vmatpush1.msra.mxu0 0.0
    %264 = vmatprep.subr.mxu0 0.0
    %265 = vmatpush1.msra.mxu0 0.0
    %266 = vmatprep.subr.mxu0 0.0
    %267 = vmatpush1.msra.mxu0 0.0
    %268 = vmatprep.subr.mxu0 0.0
    %269 = vmatpush1.msra.mxu0 0.0
    %270 = vmatprep.subr.mxu0 0.0
    %271 = vmatpush1.msra.mxu0 0.0
    %272 = vmatprep.subr.mxu0 0.0
    %273 = vmatpush1.msra.mxu0 0.0
    %274 = vmatprep.subr.mxu0 0.0
    %275 = vmatpush1.msra.mxu0 0.0
    %276 = vmatprep.subr.mxu0 0.0
    %277 = vmatpush1.msra.mxu0 0.0
    %278 = vmatprep.subr.mxu0 0.0
    %279 = vmatpush1.msra.mxu0 0.0
    %280 = vmatprep.mubr.f32.mxu0 0.0
    %281 = vmatmul.mubr.f32.gmra.mrb[0].mxu0 %v143
    %v282 = vpop.f32.mrb[0].mxu0
    %v283 = vadd.f32 0.0, %v282
    %v284 = vpop.f32.mrb[0].mxu0
    %285 = vdwg.mxu0
    %286 = vst.msk [vmem:[#allocation8 + $0x8] sm:$0xff] %vm59, %v283
    // Predicated region
    $region26: #{tpu_custom_call.1} parent=1 // pred_check
      _
    $region27: #{tpu_custom_call.1} parent=1 // pred_check_branch
      %288 = sbr.rel (0) target = $region29
    $region28: #{tpu_custom_call.1} parent=1 // pred_region
      %s290 = ssub.s32 256, 256
      %291 = vsyncadd [#allocation4], %s290
      %s292 = sshll.u32 [#allocation8], 4
      %s293 = int_to_ptr.vmem [resolvable:$true] %s292
      %298 = dma.vmem_to_hbm [thread:$0]  %s293, 256, %s3, [#allocation4], 128, 128, 8
    $region29: #{tpu_custom_call.1} parent=1 // pred_fallthru
      _
    // Predicated region
    $region30: #{tpu_custom_call.1} parent=1 // pred_check
      _
    $region31: #{tpu_custom_call.1} parent=1 // pred_check_branch
      %300 = sbr.rel (0) target = $region33
    $region32: #{tpu_custom_call.1} parent=1 // pred_region
      %301 = dma.done [#allocation4], 256
    $region33: #{tpu_custom_call.1} parent=1 // pred_fallthru
      _
    %302 = vsyncpa [#allocation3], 1
    %303 = vsyncpa [#allocation6], 1
    %304 = vsyncpa [#allocation4], 1

</llo_original>
